<compile_context>
chip_gen: v7x
topology: tpu7x:2x2x1
jax: 0.10.0
libtpu: 0.0.40
codegen_flags: <defaults>
</compile_context>

<pallas_src>
import functools

import jax
import jax.numpy as jnp
from jax.experimental import pallas as pl
from jax.experimental.pallas import tpu as pltpu


def _round_up(a, m):
    return (a + m - 1) // m * m


def latent_disc_kernel(x_ref, w1_ref, b1_ref, w2_ref, b2_ref, wh_ref, bh_ref,
                       out_c_ref, out_d_ref, *, class_dim):
    # fc1 + relu  (bf16 operands into the MXU, f32 accumulate + elementwise)
    x = x_ref[...].astype(jnp.bfloat16)
    h1 = jnp.dot(x, w1_ref[...], preferred_element_type=jnp.float32) + b1_ref[...]
    h1 = jnp.maximum(h1, 0.0)

    # fc2 + relu
    h2 = jnp.dot(h1.astype(jnp.bfloat16), w2_ref[...],
                 preferred_element_type=jnp.float32) + b2_ref[...]
    h2 = jnp.maximum(h2, 0.0)

    # fused heads: columns [0:class_dim] = class logits, column class_dim =
    # discriminator logit, remaining columns = zero-weight padding.
    logits = jnp.dot(h2.astype(jnp.bfloat16), wh_ref[...],
                     preferred_element_type=jnp.float32) + bh_ref[...]

    col = jax.lax.broadcasted_iota(jnp.int32, logits.shape, 1)
    is_class = col < class_dim
    is_disc = col == class_dim

    # --- softmax over the class columns (single full-tile exp pass) ---
    neg = jnp.float32(-1e30)
    class_logits = jnp.where(is_class, logits, neg)
    m = jnp.max(class_logits, axis=1, keepdims=True)
    e = jnp.exp(class_logits - m)            # disc / padding columns -> 0
    denom = jnp.sum(e, axis=1, keepdims=True)
    probs = e / denom                        # exact normalization (sums to 1)

    # --- sigmoid on the (tb, 1) discriminator column only ---
    d_logit = jnp.sum(jnp.where(is_disc, logits, 0.0), axis=1, keepdims=True)
    sig = 1.0 / (1.0 + jnp.exp(-d_logit))

    out_c_ref[...] = probs[:, :class_dim].astype(out_c_ref.dtype)
    out_d_ref[...] = sig.astype(out_d_ref.dtype)


def prepare_params(params):
    """One-time weight fusion + bf16 cast (hoisted out of the forward path)."""
    class_dim = params["wc"].shape[1]
    head_w = _round_up(class_dim + 1, 128)   # lane-dense fused head width

    wh = jnp.zeros((128, head_w), jnp.float32)
    wh = wh.at[:, :class_dim].set(params["wc"])
    wh = wh.at[:, class_dim:class_dim + 1].set(params["wd"])
    bh = jnp.zeros((1, head_w), jnp.float32)
    bh = bh.at[:, :class_dim].set(params["bc"][0])
    bh = bh.at[:, class_dim:class_dim + 1].set(params["bd"][0])

    return dict(
        w1=params["w1"].astype(jnp.bfloat16),
        b1=params["b1"].astype(jnp.float32),
        w2=params["w2"].astype(jnp.bfloat16),
        b2=params["b2"].astype(jnp.float32),
        wh=wh.astype(jnp.bfloat16),
        bh=bh.astype(jnp.float32),
        class_dim=class_dim,
        head_w=head_w,
    )


def latent_discriminator(x, prep, *, tile_b=2048):
    """x: (B, feat_dim) float32. prep: output of prepare_params().

    Returns (out_d: (B, 1), out_c: (B, class_dim)) in float32.
    """
    B, feat_dim = x.shape
    class_dim = prep["class_dim"]
    head_w = prep["head_w"]

    # Batch tile: as large as possible (amortizes ~0.35 us/step overhead) but
    # keep >= 2 grid steps when B allows so ("parallel",) shards the batch
    # axis across both v7x TensorCores. Rows are a multiple of 8 (sublane).
    if B > 8:
        tb = min(tile_b, _round_up(pl.cdiv(B, 2), 8))
    else:
        tb = _round_up(max(B, 1), 8)
    grid = (pl.cdiv(B, tb),)   # no wrapper-side pad: last partial block's
                               # garbage rows are row-independent & dropped

    const = lambda i: (0, 0)   # weights / biases: resident in VMEM
    tile = lambda i: (i, 0)    # x / outputs: tiled along the batch

    flops = 2 * B * (feat_dim * 256 + 256 * 128 + 128 * head_w)
    bytes_accessed = int(
        x.size * x.dtype.itemsize
        + prep["w1"].size * 2 + prep["w2"].size * 2 + prep["wh"].size * 2
        + (prep["b1"].size + prep["b2"].size + prep["bh"].size) * 4
        + B * (class_dim + 1) * 4)

    kernel = functools.partial(latent_disc_kernel, class_dim=class_dim)

    out_c, out_d = pl.pallas_call(
        kernel,
        out_shape=(jax.ShapeDtypeStruct((B, class_dim), jnp.float32),
                   jax.ShapeDtypeStruct((B, 1), jnp.float32)),
        grid=grid,
        in_specs=[
            pl.BlockSpec((tb, feat_dim), tile),     # x
            pl.BlockSpec((feat_dim, 256), const),   # w1 (bf16)
            pl.BlockSpec((1, 256), const),          # b1
            pl.BlockSpec((256, 128), const),        # w2 (bf16)
            pl.BlockSpec((1, 128), const),          # b2
            pl.BlockSpec((128, head_w), const),     # fused head weight (bf16)
            pl.BlockSpec((1, head_w), const),       # fused head bias
        ],
        out_specs=(pl.BlockSpec((tb, class_dim), tile),
                   pl.BlockSpec((tb, 1), tile)),
        compiler_params=pltpu.CompilerParams(
            dimension_semantics=("parallel",),
            vmem_limit_bytes=32 * 1024 * 1024),
        cost_estimate=pl.CostEstimate(
            flops=flops,
            transcendentals=B * (head_w + 2),
            bytes_accessed=bytes_accessed),
    )(x, prep["w1"], prep["b1"], prep["w2"], prep["b2"], prep["wh"], prep["bh"])

    return out_d, out_c


def init_params(key, feat_dim, class_dim):
    """Deterministic synthetic init. Weights stored as (in, out); biases as (1, out)."""
    ks = jax.random.split(key, 8)

    def lin(kw, kb, fan_in, fan_out):
        bound = 1.0 / jnp.sqrt(fan_in)
        w = jax.random.uniform(kw, (fan_in, fan_out), jnp.float32, -bound, bound)
        b = jax.random.uniform(kb, (1, fan_out), jnp.float32, -bound, bound)
        return w, b

    w1, b1 = lin(ks[0], ks[1], feat_dim, 256)
    w2, b2 = lin(ks[2], ks[3], 256, 128)
    wc, bc = lin(ks[4], ks[5], 128, class_dim)
    wd, bd = lin(ks[6], ks[7], 128, 1)
    return dict(w1=w1, b1=b1, w2=w2, b2=b2, wc=wc, bc=bc, wd=wd, bd=bd)


def reference_forward(x, p):
    """Pure-JAX f32 reference mirroring the PyTorch module."""
    h1 = jax.nn.relu(x @ p["w1"] + p["b1"])
    h2 = jax.nn.relu(h1 @ p["w2"] + p["b2"])
    out_c = jax.nn.softmax(h2 @ p["wc"] + p["bc"], axis=1)
    out_d = jax.nn.sigmoid(h2 @ p["wd"] + p["bd"])
    return out_d, out_c


if __name__ == "__main__":
    key = jax.random.PRNGKey(0)
    k_x, k_p = jax.random.split(key)

    batch = 2
    feat_dim = 32
    class_dim = 4

    x = jax.random.normal(k_x, (batch, feat_dim), jnp.float32)
    params = init_params(k_p, feat_dim, class_dim)
    prep = prepare_params(params)   # one-time fuse + cast

    out_d, out_c = latent_discriminator(x, prep)
    out_d = jax.block_until_ready(out_d)
    out_c = jax.block_until_ready(out_c)

    # sanity check against pure-JAX f32 reference (kernel uses bf16 MXU
    # operands, so per-element tolerance is a few 1e-3 .. 1e-2; softmax
    # normalization itself is exact f32)
    ref_d, ref_c = reference_forward(x, params)
    assert out_d.shape == (batch, 1)
    assert out_c.shape == (batch, class_dim)
    assert jnp.allclose(jnp.sum(out_c, axis=1), 1.0, atol=1e-3)
    assert jnp.allclose(out_d, ref_d, atol=2e-2, rtol=2e-2)
    assert jnp.allclose(out_c, ref_c, atol=2e-2, rtol=2e-2)

    print("KERNEL_OK")
</pallas_src>

<mosaic_0001>
module attributes {stable_mosaic.version = 11 : i64} {
  func.func @latent_disc_kernel(%arg0: i32, %arg1: memref<8x32xf32, #tpu.memory_space<vmem>>, %arg2: memref<32x256xbf16, #tpu.memory_space<vmem>>, %arg3: memref<1x256xf32, #tpu.memory_space<vmem>>, %arg4: memref<256x128xbf16, #tpu.memory_space<vmem>>, %arg5: memref<1x128xf32, #tpu.memory_space<vmem>>, %arg6: memref<128x128xbf16, #tpu.memory_space<vmem>>, %arg7: memref<1x128xf32, #tpu.memory_space<vmem>>, %arg8: memref<8x4xf32, #tpu.memory_space<vmem>>, %arg9: memref<8x1xf32, #tpu.memory_space<vmem>>) attributes {dimension_semantics = [#tpu.dimension_semantics<parallel>], iteration_bounds = array<i64: 1>, scalar_prefetch = 0 : i64, scratch_operands = 0 : i64, tpu.core_type = #tpu.core_type<tc>, window_params = [{transform_indices = @transform_0, window_bounds = array<i64: 8, 32>}, {pipeline_mode = #tpu.pipeline_mode<synchronous>, transform_indices = @transform_1, window_bounds = array<i64: 32, 256>}, {pipeline_mode = #tpu.pipeline_mode<synchronous>, transform_indices = @transform_2, window_bounds = array<i64: 1, 256>}, {pipeline_mode = #tpu.pipeline_mode<synchronous>, transform_indices = @transform_3, window_bounds = array<i64: 256, 128>}, {pipeline_mode = #tpu.pipeline_mode<synchronous>, transform_indices = @transform_4, window_bounds = array<i64: 1, 128>}, {pipeline_mode = #tpu.pipeline_mode<synchronous>, transform_indices = @transform_5, window_bounds = array<i64: 128, 128>}, {pipeline_mode = #tpu.pipeline_mode<synchronous>, transform_indices = @transform_6, window_bounds = array<i64: 1, 128>}, {transform_indices = @transform_7, window_bounds = array<i64: 8, 4>}, {transform_indices = @transform_8, window_bounds = array<i64: 8, 1>}]} {
    %c0 = arith.constant 0 : index
    %c0_0 = arith.constant 0 : index
    %0 = vector.load %arg1[%c0, %c0_0] : memref<8x32xf32, #tpu.memory_space<vmem>>, vector<8x32xf32>
    %1 = arith.truncf %0 : vector<8x32xf32> to vector<8x32xbf16>
    %c0_1 = arith.constant 0 : index
    %c0_2 = arith.constant 0 : index
    %2 = vector.load %arg2[%c0_1, %c0_2] : memref<32x256xbf16, #tpu.memory_space<vmem>>, vector<32x256xbf16>
    %cst = arith.constant dense<0.000000e+00> : vector<8x256xf32>
    %3 = tpu.matmul %1, %2, %cst {dimension_numbers = #tpu.dot_dimension_numbers<[1], [0], [0], [1], [0, 0, 1, 1], [], []>} : vector<8x32xbf16>, vector<32x256xbf16>, vector<8x256xf32> -> vector<8x256xf32>
    %c0_3 = arith.constant 0 : index
    %c0_4 = arith.constant 0 : index
    %4 = vector.load %arg3[%c0_3, %c0_4] : memref<1x256xf32, #tpu.memory_space<vmem>>, vector<1x256xf32>
    %5 = vector.broadcast %4 : vector<1x256xf32> to vector<8x256xf32>
    %6 = arith.addf %3, %5 : vector<8x256xf32>
    %cst_5 = arith.constant 0.000000e+00 : f32
    %7 = vector.broadcast %cst_5 : f32 to vector<8x256xf32>
    %8 = arith.maximumf %6, %7 : vector<8x256xf32>
    %9 = arith.truncf %8 : vector<8x256xf32> to vector<8x256xbf16>
    %c0_6 = arith.constant 0 : index
    %c0_7 = arith.constant 0 : index
    %10 = vector.load %arg4[%c0_6, %c0_7] : memref<256x128xbf16, #tpu.memory_space<vmem>>, vector<256x128xbf16>
    %cst_8 = arith.constant dense<0.000000e+00> : vector<8x128xf32>
    %11 = tpu.matmul %9, %10, %cst_8 {dimension_numbers = #tpu.dot_dimension_numbers<[1], [0], [0], [1], [0, 0, 1, 1], [], []>} : vector<8x256xbf16>, vector<256x128xbf16>, vector<8x128xf32> -> vector<8x128xf32>
    %c0_9 = arith.constant 0 : index
    %c0_10 = arith.constant 0 : index
    %12 = vector.load %arg5[%c0_9, %c0_10] : memref<1x128xf32, #tpu.memory_space<vmem>>, vector<1x128xf32>
    %13 = vector.broadcast %12 : vector<1x128xf32> to vector<8x128xf32>
    %14 = arith.addf %11, %13 : vector<8x128xf32>
    %cst_11 = arith.constant 0.000000e+00 : f32
    %15 = vector.broadcast %cst_11 : f32 to vector<8x128xf32>
    %16 = arith.maximumf %14, %15 : vector<8x128xf32>
    %17 = arith.truncf %16 : vector<8x128xf32> to vector<8x128xbf16>
    %c0_12 = arith.constant 0 : index
    %c0_13 = arith.constant 0 : index
    %18 = vector.load %arg6[%c0_12, %c0_13] : memref<128x128xbf16, #tpu.memory_space<vmem>>, vector<128x128xbf16>
    %cst_14 = arith.constant dense<0.000000e+00> : vector<8x128xf32>
    %19 = tpu.matmul %17, %18, %cst_14 {dimension_numbers = #tpu.dot_dimension_numbers<[1], [0], [0], [1], [0, 0, 1, 1], [], []>} : vector<8x128xbf16>, vector<128x128xbf16>, vector<8x128xf32> -> vector<8x128xf32>
    %c0_15 = arith.constant 0 : index
    %c0_16 = arith.constant 0 : index
    %20 = vector.load %arg7[%c0_15, %c0_16] : memref<1x128xf32, #tpu.memory_space<vmem>>, vector<1x128xf32>
    %21 = vector.broadcast %20 : vector<1x128xf32> to vector<8x128xf32>
    %22 = arith.addf %19, %21 : vector<8x128xf32>
    %23 = tpu.iota {dimensions = array<i32: 1>} : vector<8x128xi32>
    %c4_i32 = arith.constant 4 : i32
    %24 = vector.broadcast %c4_i32 : i32 to vector<8x128xi32>
    %25 = arith.cmpi slt, %23, %24 : vector<8x128xi32>
    %c4_i32_17 = arith.constant 4 : i32
    %26 = vector.broadcast %c4_i32_17 : i32 to vector<8x128xi32>
    %27 = arith.cmpi eq, %23, %26 : vector<8x128xi32>
    %cst_18 = arith.constant -1.000000e+30 : f32
    %28 = vector.broadcast %cst_18 : f32 to vector<8x128xf32>
    %29 = arith.select %25, %22, %28 : vector<8x128xi1>, vector<8x128xf32>
    %cst_19 = arith.constant dense<0xFF800000> : vector<8xf32>
    %30 = vector.multi_reduction <maximumf>, %29, %cst_19 [1] : vector<8x128xf32> to vector<8xf32>
    %31 = vector.shape_cast %30 : vector<8xf32> to vector<8x1xf32>
    %32 = vector.broadcast %31 : vector<8x1xf32> to vector<8x128xf32>
    %33 = arith.subf %29, %32 : vector<8x128xf32>
    %34 = math.exp %33 : vector<8x128xf32>
    %cst_20 = arith.constant dense<0.000000e+00> : vector<8xf32>
    %35 = vector.multi_reduction <add>, %34, %cst_20 [1] : vector<8x128xf32> to vector<8xf32>
    %36 = vector.shape_cast %35 : vector<8xf32> to vector<8x1xf32>
    %37 = vector.broadcast %36 : vector<8x1xf32> to vector<8x128xf32>
    %38 = arith.divf %34, %37 : vector<8x128xf32>
    %cst_21 = arith.constant 0.000000e+00 : f32
    %39 = vector.broadcast %cst_21 : f32 to vector<8x128xf32>
    %40 = arith.select %27, %22, %39 : vector<8x128xi1>, vector<8x128xf32>
    %cst_22 = arith.constant dense<0.000000e+00> : vector<8xf32>
    %41 = vector.multi_reduction <add>, %40, %cst_22 [1] : vector<8x128xf32> to vector<8xf32>
    %42 = vector.shape_cast %41 : vector<8xf32> to vector<8x1xf32>
    %cst_23 = arith.constant 0.000000e+00 : f32
    %43 = vector.broadcast %cst_23 : f32 to vector<8x1xf32>
    %44 = arith.subf %43, %42 : vector<8x1xf32>
    %45 = math.exp %44 : vector<8x1xf32>
    %cst_24 = arith.constant 1.000000e+00 : f32
    %46 = vector.broadcast %cst_24 : f32 to vector<8x1xf32>
    %47 = arith.addf %46, %45 : vector<8x1xf32>
    %cst_25 = arith.constant 1.000000e+00 : f32
    %48 = vector.broadcast %cst_25 : f32 to vector<8x1xf32>
    %49 = arith.divf %48, %47 : vector<8x1xf32>
    %50 = vector.extract_strided_slice %38 {offsets = [0, 0], sizes = [8, 4], strides = [1, 1]} : vector<8x128xf32> to vector<8x4xf32>
    %c0_26 = arith.constant 0 : index
    %c0_27 = arith.constant 0 : index
    %51 = vector.load %arg8[%c0_26, %c0_27] : memref<8x4xf32, #tpu.memory_space<vmem>>, vector<8x4xf32>
    tpu.vector_store %arg8[%c0_26, %c0_27], %50 {strides = array<i32>} : memref<8x4xf32, #tpu.memory_space<vmem>>, vector<8x4xf32>,
    %c0_28 = arith.constant 0 : index
    %c0_29 = arith.constant 0 : index
    %52 = vector.load %arg9[%c0_28, %c0_29] : memref<8x1xf32, #tpu.memory_space<vmem>>, vector<8x1xf32>
    tpu.vector_store %arg9[%c0_28, %c0_29], %49 {strides = array<i32>} : memref<8x1xf32, #tpu.memory_space<vmem>>, vector<8x1xf32>,
    return
  }
  func.func @transform_0(%arg0: i32) -> (i32, i32) {
    %c0_i32 = arith.constant 0 : i32
    %c0_i32_0 = arith.constant 0 : i32
    return %arg0, %c0_i32 : i32, i32
  }
  func.func @transform_1(%arg0: i32) -> (i32, i32) {
    %c0_i32 = arith.constant 0 : i32
    %c0_i32_0 = arith.constant 0 : i32
    %c0_i32_1 = arith.constant 0 : i32
    return %c0_i32, %c0_i32_0 : i32, i32
  }
  func.func @transform_2(%arg0: i32) -> (i32, i32) {
    %c0_i32 = arith.constant 0 : i32
    %c0_i32_0 = arith.constant 0 : i32
    %c0_i32_1 = arith.constant 0 : i32
    return %c0_i32, %c0_i32_0 : i32, i32
  }
  func.func @transform_3(%arg0: i32) -> (i32, i32) {
    %c0_i32 = arith.constant 0 : i32
    %c0_i32_0 = arith.constant 0 : i32
    %c0_i32_1 = arith.constant 0 : i32
    return %c0_i32, %c0_i32_0 : i32, i32
  }
  func.func @transform_4(%arg0: i32) -> (i32, i32) {
    %c0_i32 = arith.constant 0 : i32
    %c0_i32_0 = arith.constant 0 : i32
    %c0_i32_1 = arith.constant 0 : i32
    return %c0_i32, %c0_i32_0 : i32, i32
  }
  func.func @transform_5(%arg0: i32) -> (i32, i32) {
    %c0_i32 = arith.constant 0 : i32
    %c0_i32_0 = arith.constant 0 : i32
    %c0_i32_1 = arith.constant 0 : i32
    return %c0_i32, %c0_i32_0 : i32, i32
  }
  func.func @transform_6(%arg0: i32) -> (i32, i32) {
    %c0_i32 = arith.constant 0 : i32
    %c0_i32_0 = arith.constant 0 : i32
    %c0_i32_1 = arith.constant 0 : i32
    return %c0_i32, %c0_i32_0 : i32, i32
  }
  func.func @transform_7(%arg0: i32) -> (i32, i32) {
    %c0_i32 = arith.constant 0 : i32
    %c0_i32_0 = arith.constant 0 : i32
    return %arg0, %c0_i32 : i32, i32
  }
  func.func @transform_8(%arg0: i32) -> (i32, i32) {
    %c0_i32 = arith.constant 0 : i32
    %c0_i32_0 = arith.constant 0 : i32
    return %arg0, %c0_i32 : i32, i32
  }
}

</mosaic_0001>

<llo_original>
// kernel: tpu_custom_call.1
$region0: #{tpu_custom_call.1}
  #allocation0 [shape = 'u32[]', space=smem, size = 0x4, offset = 0x4, fixed_abs, tag = 'smem constant byte address 0x4 - core index']
  #allocation1 [shape = 'u32[144,128]{1,0:T(1,128)}', space=vmem, size = 0x12000, scoped, tag = 'internal scratch']
  %s0 = inlined_call_operand.hbm [shape: f32[2,32], index: 0, kind: input, shape index: {}]
  %s1 = inlined_call_operand.hbm [shape: bf16[32,256], index: 1, kind: input, shape index: {}]
  %s2 = inlined_call_operand.vmem [shape: f32[1,256], index: 2, kind: input, shape index: {}]
  %s3 = inlined_call_operand.hbm [shape: bf16[256,128], index: 3, kind: input, shape index: {}]
  %s4 = inlined_call_operand.vmem [shape: f32[1,128], index: 4, kind: input, shape index: {}]
  %s5 = inlined_call_operand.hbm [shape: bf16[128,128], index: 5, kind: input, shape index: {}]
  %s6 = inlined_call_operand.vmem [shape: f32[1,128], index: 6, kind: input, shape index: {}]
  %s7 = inlined_call_operand.hbm [shape: f32[2,4], index: 7, kind: output, shape index: {0}]
  %s8 = inlined_call_operand.vmem [shape: f32[2,1], index: 8, kind: output, shape index: {1}]
  %9 = xla_tuple %s7, %s8
  %s10 = sld [smem:[#allocation0]]
  $region92: #{tpu_custom_call.1} parent=0
    _
  %s12 = ssub.s32 1, %s10
  %s13 = scalar_select 0, %s12, %s10
  $region1: #{tpu_custom_call.1} parent=0
    #allocation2 [shape = 'u8[4096]{0}', space=vmem, size = 0x1000, scoped, tag = 'input window, operand 0, single buffered']
    #allocation3 [shape = 's32[1]{0}', space=sflag, size = 0x4, scoped, tag = 'scoped memory for tpu_custom_call.1']
    #allocation4 [shape = 's32[1]{0}', space=sflag, size = 0x4, scoped, tag = 'scoped memory for tpu_custom_call.1']
    #allocation5 [shape = 'u8[16384]{0}', space=vmem, size = 0x4000, scoped, tag = 'input window, operand 1, single buffered']
    #allocation6 [shape = 's32[1]{0}', space=sflag, size = 0x4, scoped, tag = 'scoped memory for tpu_custom_call.1']
    #allocation7 [shape = 'u8[65536]{0}', space=vmem, size = 0x10000, scoped, tag = 'input window, operand 3, single buffered']
    #allocation8 [shape = 'u8[32768]{0}', space=vmem, size = 0x8000, scoped, tag = 'input window, operand 5, single buffered']
    #allocation9 [shape = 's32[1]{0}', space=sflag, size = 0x4, scoped, tag = 'scoped memory for tpu_custom_call.1']
    #allocation10 [shape = 'u8[4096]{0}', space=vmem, size = 0x1000, scoped, tag = 'output window, operand 0, single buffered']
    #allocation11 [shape = 'u8[4096]{0}', space=vmem, size = 0x1000, scoped, tag = 'output window, operand 1, single buffered']
    %14 = vsyncpa [#allocation3], 0
    %15 = vsyncpa [#allocation6], 0
    %16 = vsyncpa [#allocation9], 0
    %17 = vsyncpa [#allocation4], 0
    // Predicated region
    $region2: #{tpu_custom_call.1} parent=1 // pred_check
      _
    $region3: #{tpu_custom_call.1} parent=1 // pred_check_branch
      %19 = sbr.rel (0) target = $region5
    $region4: #{tpu_custom_call.1} parent=1 // pred_region
      %s21 = ssub.s32 128, 32
      %22 = vsyncadd [#allocation3], %s21
      %s23 = sshll.u32 [#allocation2], 4
      %s24 = int_to_ptr.vmem [resolvable:$true] %s23
      %29 = dma.hbm_to_vmem [thread:$0]  %s0, 32, %s24, [#allocation3], 32, 32, 2
    $region5: #{tpu_custom_call.1} parent=1 // pred_fallthru
      _
    // Predicated region
    $region6: #{tpu_custom_call.1} parent=1 // pred_check
      _
    $region7: #{tpu_custom_call.1} parent=1 // pred_check_branch
      %31 = sbr.rel (0) target = $region9
    $region8: #{tpu_custom_call.1} parent=1 // pred_region
      %s33 = ssub.s32 512, 512
      %34 = vsyncadd [#allocation6], %s33
      %s35 = sshll.u32 [#allocation5], 4
      %s36 = int_to_ptr.vmem [resolvable:$true] %s35
      %41 = dma.hbm_to_vmem [thread:$0]  %s1, 512, %s36, [#allocation6], 128, 128, 8
    $region9: #{tpu_custom_call.1} parent=1 // pred_fallthru
      _
    // Predicated region
    $region10: #{tpu_custom_call.1} parent=1 // pred_check
      _
    $region11: #{tpu_custom_call.1} parent=1 // pred_check_branch
      %43 = sbr.rel (0) target = $region13
    $region12: #{tpu_custom_call.1} parent=1 // pred_region
      _
    $region13: #{tpu_custom_call.1} parent=1 // pred_fallthru
      _
    // Predicated region
    $region14: #{tpu_custom_call.1} parent=1 // pred_check
      _
    $region15: #{tpu_custom_call.1} parent=1 // pred_check_branch
      %45 = sbr.rel (0) target = $region17
    $region16: #{tpu_custom_call.1} parent=1 // pred_region
      %s47 = ssub.s32 2048, 2048
      %48 = vsyncadd [#allocation6], %s47
      %s49 = sshll.u32 [#allocation7], 4
      %s50 = int_to_ptr.vmem [resolvable:$true] %s49
      %55 = dma.hbm_to_vmem [thread:$0]  %s3, 2048, %s50, [#allocation6], 64, 64, 4
    $region17: #{tpu_custom_call.1} parent=1 // pred_fallthru
      _
    // Predicated region
    $region18: #{tpu_custom_call.1} parent=1 // pred_check
      _
    $region19: #{tpu_custom_call.1} parent=1 // pred_check_branch
      %57 = sbr.rel (0) target = $region21
    $region20: #{tpu_custom_call.1} parent=1 // pred_region
      _
    $region21: #{tpu_custom_call.1} parent=1 // pred_fallthru
      _
    // Predicated region
    $region22: #{tpu_custom_call.1} parent=1 // pred_check
      _
    $region23: #{tpu_custom_call.1} parent=1 // pred_check_branch
      %59 = sbr.rel (0) target = $region25
    $region24: #{tpu_custom_call.1} parent=1 // pred_region
      %s61 = ssub.s32 1024, 1024
      %62 = vsyncadd [#allocation9], %s61
      %s63 = sshll.u32 [#allocation8], 4
      %s64 = int_to_ptr.vmem [resolvable:$true] %s63
      %69 = dma.hbm_to_vmem [thread:$0]  %s5, 1024, %s64, [#allocation9], 64, 64, 4
    $region25: #{tpu_custom_call.1} parent=1 // pred_fallthru
      _
    // Predicated region
    $region26: #{tpu_custom_call.1} parent=1 // pred_check
      _
    $region27: #{tpu_custom_call.1} parent=1 // pred_check_branch
      %71 = sbr.rel (0) target = $region29
    $region28: #{tpu_custom_call.1} parent=1 // pred_region
      _
    $region29: #{tpu_custom_call.1} parent=1 // pred_fallthru
      _
    // Predicated region
    $region30: #{tpu_custom_call.1} parent=1 // pred_check
      _
    $region31: #{tpu_custom_call.1} parent=1 // pred_check_branch
      %73 = sbr.rel (0) target = $region33
    $region32: #{tpu_custom_call.1} parent=1 // pred_region
      %74 = dma.done [#allocation3], 128
    $region33: #{tpu_custom_call.1} parent=1 // pred_fallthru
      _
    // Predicated region
    $region34: #{tpu_custom_call.1} parent=1 // pred_check
      _
    $region35: #{tpu_custom_call.1} parent=1 // pred_check_branch
      %76 = sbr.rel (0) target = $region37
    $region36: #{tpu_custom_call.1} parent=1 // pred_region
      %77 = dma.done [#allocation6], 512
    $region37: #{tpu_custom_call.1} parent=1 // pred_fallthru
      _
    // Predicated region
    $region38: #{tpu_custom_call.1} parent=1 // pred_check
      _
    $region39: #{tpu_custom_call.1} parent=1 // pred_check_branch
      %79 = sbr.rel (0) target = $region41
    $region40: #{tpu_custom_call.1} parent=1 // pred_region
      %80 = dma.done [#allocation6], 2048
    $region41: #{tpu_custom_call.1} parent=1 // pred_fallthru
      _
    // Predicated region
    $region42: #{tpu_custom_call.1} parent=1 // pred_check
      _
    $region43: #{tpu_custom_call.1} parent=1 // pred_check_branch
      %82 = sbr.rel (0) target = $region45
    $region44: #{tpu_custom_call.1} parent=1 // pred_region
      %83 = dma.done [#allocation9], 1024
    $region45: #{tpu_custom_call.1} parent=1 // pred_fallthru
      _
    %v85 = vld [vmem:[#allocation2] sm:$0xff]
    %v86 = vpack.c.bf16 %v85, %v85
    %v87 = vld [vmem:[#allocation5] sm:$0xff]
    %v88 = vld [vmem:[#allocation5 + $0x8] sm:$0xff]
    %v89 = vld [vmem:[#allocation5 + $0x10] sm:$0xff]
    %v90 = vld [vmem:[#allocation5 + $0x18] sm:$0xff]
    %v91 = vld [vmem:[%s2] sm:$0x3]
    %v93 = vlaneseq
    %v94 = vshrl.u32 %v93, 7
    %v95 = vsub.s32 0, %v94
    %v96 = vrot.slane %v91, %v95
    %v97 = vlaneseq
    %v98 = vshrl.u32 %v97, 7
    %v99 = vsub.s32 1, %v98
    %v100 = vrot.slane %v91, %v99
    %v107 = vunpack.c.l.b16 %v87
    %v108 = vunpack.c.h.b16 %v87
    %v109 = vunpack.c.l.b16 %v88
    %v110 = vunpack.c.h.b16 %v88
    %v111 = vunpack.c.l.b16 %v89
    %v112 = vunpack.c.h.b16 %v89
    %v113 = vunpack.c.l.b16 %v90
    %v114 = vunpack.c.h.b16 %v90
    %v115 = vpack.c.b16 %v109, %v107
    %v116 = vpack.c.b16 %v110, %v108
    %v117 = vpack.c.b16 %v113, %v111
    %v118 = vpack.c.b16 %v114, %v112
    %vm123 = vcmask 261120
    %v125 = vsel %vm123, %v86, 0
    %127 = vmatprep.subr.bf16.mxu0 %v116
    %128 = vmatpush1.bf16.msra.mxu0 %v115
    %129 = vmatprep.subr.bf16.mxu0 %v118
    %130 = vmatpush1.bf16.msra.mxu0 %v117
    %131 = vmatprep.subr.bf16.mxu0 0
    %132 = vmatpush1.bf16.msra.mxu0 0
    %133 = vmatprep.subr.bf16.mxu0 0
    %134 = vmatpush1.bf16.msra.mxu0 0
    %135 = vmatprep.subr.bf16.mxu0 0
    %136 = vmatpush1.bf16.msra.mxu0 0
    %137 = vmatprep.subr.bf16.mxu0 0
    %138 = vmatpush1.bf16.msra.mxu0 0
    %139 = vmatprep.subr.bf16.mxu0 0
    %140 = vmatpush1.bf16.msra.mxu0 0
    %141 = vmatprep.subr.bf16.mxu0 0
    %142 = vmatpush1.bf16.msra.mxu0 0
    %143 = vmatprep.subr.bf16.mxu0 0
    %144 = vmatpush1.bf16.msra.mxu0 0
    %145 = vmatprep.subr.bf16.mxu0 0
    %146 = vmatpush1.bf16.msra.mxu0 0
    %147 = vmatprep.subr.bf16.mxu0 0
    %148 = vmatpush1.bf16.msra.mxu0 0
    %149 = vmatprep.subr.bf16.mxu0 0
    %150 = vmatpush1.bf16.msra.mxu0 0
    %151 = vmatprep.subr.bf16.mxu0 0
    %152 = vmatpush1.bf16.msra.mxu0 0
    %153 = vmatprep.subr.bf16.mxu0 0
    %154 = vmatpush1.bf16.msra.mxu0 0
    %155 = vmatprep.subr.bf16.mxu0 0
    %156 = vmatpush1.bf16.msra.mxu0 0
    %157 = vmatprep.subr.bf16.mxu0 0
    %158 = vmatpush1.bf16.msra.mxu0 0
    %159 = vmatprep.mubr.bf16.mxu0 0
    %160 = vmatmul.mubr.bf16.gmra.mrb[0].mxu0 %v125
    %v161 = vpop.f32.mrb[0].mxu0
    %v162 = vadd.f32 %v96, %v161
    %v163 = vpop.f32.mrb[0].mxu0
    %v164 = vadd.f32 %v100, %v163
    %v165 = vpop.f32.mrb[0].mxu0
    %v166 = vpop.f32.mrb[0].mxu0
    %167 = vdwg.mxu0
    %v168 = vmax.f32 %v162, 0.0
    %v169 = vmax.f32 %v164, 0.0
    %v170 = vpack.c.bf16 %v168, %v168
    %v171 = vpack.c.bf16 %v169, %v169
    %v172 = vld [vmem:[#allocation7] sm:$0xf]
    %v173 = vld [vmem:[#allocation7 + $0x4] sm:$0xf]
    %v174 = vld [vmem:[#allocation7 + $0x8] sm:$0xf]
    %v175 = vld [vmem:[#allocation7 + $0xc] sm:$0xf]
    %v176 = vld [vmem:[#allocation7 + $0x10] sm:$0xf]
    %v177 = vld [vmem:[#allocation7 + $0x14] sm:$0xf]
    %v178 = vld [vmem:[#allocation7 + $0x18] sm:$0xf]
    %v179 = vld [vmem:[#allocation7 + $0x1c] sm:$0xf]
    %v180 = vld [vmem:[#allocation7 + $0x20] sm:$0xf]
    %v181 = vld [vmem:[#allocation7 + $0x24] sm:$0xf]
    %v182 = vld [vmem:[#allocation7 + $0x28] sm:$0xf]
    %v183 = vld [vmem:[#allocation7 + $0x2c] sm:$0xf]
    %v184 = vld [vmem:[#allocation7 + $0x30] sm:$0xf]
    %v185 = vld [vmem:[#allocation7 + $0x34] sm:$0xf]
    %v186 = vld [vmem:[#allocation7 + $0x38] sm:$0xf]
    %v187 = vld [vmem:[#allocation7 + $0x3c] sm:$0xf]
    %v188 = vld [vmem:[#allocation7 + $0x40] sm:$0xf]
    %v189 = vld [vmem:[#allocation7 + $0x44] sm:$0xf]
    %v190 = vld [vmem:[#allocation7 + $0x48] sm:$0xf]
    %v191 = vld [vmem:[#allocation7 + $0x4c] sm:$0xf]
    %v192 = vld [vmem:[#allocation7 + $0x50] sm:$0xf]
    %v193 = vld [vmem:[#allocation7 + $0x54] sm:$0xf]
    %v194 = vld [vmem:[#allocation7 + $0x58] sm:$0xf]
    %v195 = vld [vmem:[#allocation7 + $0x5c] sm:$0xf]
    %v196 = vld [vmem:[#allocation7 + $0x60] sm:$0xf]
    %v197 = vld [vmem:[#allocation7 + $0x64] sm:$0xf]
    %v198 = vld [vmem:[#allocation7 + $0x68] sm:$0xf]
    %v199 = vld [vmem:[#allocation7 + $0x6c] sm:$0xf]
    %v200 = vld [vmem:[#allocation7 + $0x70] sm:$0xf]
    %v201 = vld [vmem:[#allocation7 + $0x74] sm:$0xf]
    %v202 = vld [vmem:[#allocation7 + $0x78] sm:$0xf]
    %v203 = vld [vmem:[#allocation7 + $0x7c] sm:$0xf]
    %v204 = vld [vmem:[%s4] sm:$0x1]
    %v206 = vlaneseq
    %v207 = vshrl.u32 %v206, 7
    %v208 = vsub.s32 0, %v207
    %v209 = vrot.slane %v204, %v208
    %v243 = vunpack.c.l.b16 %v172
    %v244 = vunpack.c.l.b16 %v173
    %v245 = vunpack.c.l.b16 %v174
    %v246 = vunpack.c.l.b16 %v175
    %v247 = vunpack.c.l.b16 %v176
    %v248 = vunpack.c.l.b16 %v177
    %v249 = vunpack.c.l.b16 %v178
    %v250 = vunpack.c.l.b16 %v179
    %v251 = vunpack.c.l.b16 %v180
    %v252 = vunpack.c.l.b16 %v181
    %v253 = vunpack.c.l.b16 %v182
    %v254 = vunpack.c.l.b16 %v183
    %v255 = vunpack.c.l.b16 %v184
    %v256 = vunpack.c.l.b16 %v185
    %v257 = vunpack.c.l.b16 %v186
    %v258 = vunpack.c.l.b16 %v187
    %v259 = vunpack.c.l.b16 %v188
    %v260 = vunpack.c.l.b16 %v189
    %v261 = vunpack.c.l.b16 %v190
    %v262 = vunpack.c.l.b16 %v191
    %v263 = vunpack.c.l.b16 %v192
    %v264 = vunpack.c.l.b16 %v193
    %v265 = vunpack.c.l.b16 %v194
    %v266 = vunpack.c.l.b16 %v195
    %v267 = vunpack.c.l.b16 %v196
    %v268 = vunpack.c.l.b16 %v197
    %v269 = vunpack.c.l.b16 %v198
    %v270 = vunpack.c.l.b16 %v199
    %v271 = vunpack.c.l.b16 %v200
    %v272 = vunpack.c.l.b16 %v201
    %v273 = vunpack.c.l.b16 %v202
    %v274 = vunpack.c.l.b16 %v203
    %v275 = vpack.c.b16 %v244, %v243
    %v276 = vpack.c.b16 %v246, %v245
    %v277 = vpack.c.b16 %v248, %v247
    %v278 = vpack.c.b16 %v250, %v249
    %v279 = vpack.c.b16 %v252, %v251
    %v280 = vpack.c.b16 %v254, %v253
    %v281 = vpack.c.b16 %v256, %v255
    %v282 = vpack.c.b16 %v258, %v257
    %v283 = vpack.c.b16 %v260, %v259
    %v284 = vpack.c.b16 %v262, %v261
    %v285 = vpack.c.b16 %v264, %v263
    %v286 = vpack.c.b16 %v266, %v265
    %v287 = vpack.c.b16 %v268, %v267
    %v288 = vpack.c.b16 %v270, %v269
    %v289 = vpack.c.b16 %v272, %v271
    %v290 = vpack.c.b16 %v274, %v273
    %307 = vmatprep.subr.bf16.mxu0 0
    %308 = vmatpush1.bf16.msra.mxu0 %v275
    %309 = vmatprep.subr.bf16.mxu0 0
    %310 = vmatpush1.bf16.msra.mxu0 %v276
    %311 = vmatprep.subr.bf16.mxu0 0
    %312 = vmatpush1.bf16.msra.mxu0 %v277
    %313 = vmatprep.subr.bf16.mxu0 0
    %314 = vmatpush1.bf16.msra.mxu0 %v278
    %315 = vmatprep.subr.bf16.mxu0 0
    %316 = vmatpush1.bf16.msra.mxu0 %v279
    %317 = vmatprep.subr.bf16.mxu0 0
    %318 = vmatpush1.bf16.msra.mxu0 %v280
    %319 = vmatprep.subr.bf16.mxu0 0
    %320 = vmatpush1.bf16.msra.mxu0 %v281
    %321 = vmatprep.subr.bf16.mxu0 0
    %322 = vmatpush1.bf16.msra.mxu0 %v282
    %323 = vmatprep.subr.bf16.mxu0 0
    %324 = vmatpush1.bf16.msra.mxu0 %v283
    %325 = vmatprep.subr.bf16.mxu0 0
    %326 = vmatpush1.bf16.msra.mxu0 %v284
    %327 = vmatprep.subr.bf16.mxu0 0
    %328 = vmatpush1.bf16.msra.mxu0 %v285
    %329 = vmatprep.subr.bf16.mxu0 0
    %330 = vmatpush1.bf16.msra.mxu0 %v286
    %331 = vmatprep.subr.bf16.mxu0 0
    %332 = vmatpush1.bf16.msra.mxu0 %v287
    %333 = vmatprep.subr.bf16.mxu0 0
    %334 = vmatpush1.bf16.msra.mxu0 %v288
    %335 = vmatprep.subr.bf16.mxu0 0
    %336 = vmatpush1.bf16.msra.mxu0 %v289
    %337 = vmatprep.subr.bf16.mxu0 0
    %338 = vmatpush1.bf16.msra.mxu0 %v290
    %339 = vmatprep.mubr.bf16.mxu0 %v171
    %340 = vmatmul.mubr.bf16.gmra.mrb[0].mxu0 %v170
    %v341 = vpop.f32.mrb[0].mxu0
    %v342 = vadd.f32 %v209, %v341
    %v343 = vpop.f32.mrb[0].mxu0
    %v344 = vpop.f32.mrb[0].mxu0
    %v345 = vpop.f32.mrb[0].mxu0
    %346 = vdwg.mxu0
    %v347 = vmax.f32 %v342, 0.0
    %v348 = vpack.c.bf16 %v347, %v347
    %v349 = vld [vmem:[#allocation8] sm:$0xf]
    %v350 = vld [vmem:[#allocation8 + $0x4] sm:$0xf]
    %v351 = vld [vmem:[#allocation8 + $0x8] sm:$0xf]
    %v352 = vld [vmem:[#allocation8 + $0xc] sm:$0xf]
    %v353 = vld [vmem:[#allocation8 + $0x10] sm:$0xf]
    %v354 = vld [vmem:[#allocation8 + $0x14] sm:$0xf]
    %v355 = vld [vmem:[#allocation8 + $0x18] sm:$0xf]
    %v356 = vld [vmem:[#allocation8 + $0x1c] sm:$0xf]
    %v357 = vld [vmem:[#allocation8 + $0x20] sm:$0xf]
    %v358 = vld [vmem:[#allocation8 + $0x24] sm:$0xf]
    %v359 = vld [vmem:[#allocation8 + $0x28] sm:$0xf]
    %v360 = vld [vmem:[#allocation8 + $0x2c] sm:$0xf]
    %v361 = vld [vmem:[#allocation8 + $0x30] sm:$0xf]
    %v362 = vld [vmem:[#allocation8 + $0x34] sm:$0xf]
    %v363 = vld [vmem:[#allocation8 + $0x38] sm:$0xf]
    %v364 = vld [vmem:[#allocation8 + $0x3c] sm:$0xf]
    %v365 = vld [vmem:[%s6] sm:$0x1]
    %v367 = vlaneseq
    %v368 = vshrl.u32 %v367, 7
    %v369 = vsub.s32 0, %v368
    %v370 = vrot.slane %v365, %v369
    %v388 = vunpack.c.l.b16 %v349
    %v389 = vunpack.c.l.b16 %v350
    %v390 = vunpack.c.l.b16 %v351
    %v391 = vunpack.c.l.b16 %v352
    %v392 = vunpack.c.l.b16 %v353
    %v393 = vunpack.c.l.b16 %v354
    %v394 = vunpack.c.l.b16 %v355
    %v395 = vunpack.c.l.b16 %v356
    %v396 = vunpack.c.l.b16 %v357
    %v397 = vunpack.c.l.b16 %v358
    %v398 = vunpack.c.l.b16 %v359
    %v399 = vunpack.c.l.b16 %v360
    %v400 = vunpack.c.l.b16 %v361
    %v401 = vunpack.c.l.b16 %v362
    %v402 = vunpack.c.l.b16 %v363
    %v403 = vunpack.c.l.b16 %v364
    %v404 = vpack.c.b16 %v389, %v388
    %v405 = vpack.c.b16 %v391, %v390
    %v406 = vpack.c.b16 %v393, %v392
    %v407 = vpack.c.b16 %v395, %v394
    %v408 = vpack.c.b16 %v397, %v396
    %v409 = vpack.c.b16 %v399, %v398
    %v410 = vpack.c.b16 %v401, %v400
    %v411 = vpack.c.b16 %v403, %v402
    %420 = vmatprep.subr.bf16.mxu0 0
    %421 = vmatpush1.bf16.msra.mxu0 %v404
    %422 = vmatprep.subr.bf16.mxu0 0
    %423 = vmatpush1.bf16.msra.mxu0 %v405
    %424 = vmatprep.subr.bf16.mxu0 0
    %425 = vmatpush1.bf16.msra.mxu0 %v406
    %426 = vmatprep.subr.bf16.mxu0 0
    %427 = vmatpush1.bf16.msra.mxu0 %v407
    %428 = vmatprep.subr.bf16.mxu0 0
    %429 = vmatpush1.bf16.msra.mxu0 %v408
    %430 = vmatprep.subr.bf16.mxu0 0
    %431 = vmatpush1.bf16.msra.mxu0 %v409
    %432 = vmatprep.subr.bf16.mxu0 0
    %433 = vmatpush1.bf16.msra.mxu0 %v410
    %434 = vmatprep.subr.bf16.mxu0 0
    %435 = vmatpush1.bf16.msra.mxu0 %v411
    %436 = vmatprep.subr.bf16.mxu0 0
    %437 = vmatpush1.bf16.msra.mxu0 0
    %438 = vmatprep.subr.bf16.mxu0 0
    %439 = vmatpush1.bf16.msra.mxu0 0
    %440 = vmatprep.subr.bf16.mxu0 0
    %441 = vmatpush1.bf16.msra.mxu0 0
    %442 = vmatprep.subr.bf16.mxu0 0
    %443 = vmatpush1.bf16.msra.mxu0 0
    %444 = vmatprep.subr.bf16.mxu0 0
    %445 = vmatpush1.bf16.msra.mxu0 0
    %446 = vmatprep.subr.bf16.mxu0 0
    %447 = vmatpush1.bf16.msra.mxu0 0
    %448 = vmatprep.subr.bf16.mxu0 0
    %449 = vmatpush1.bf16.msra.mxu0 0
    %450 = vmatprep.subr.bf16.mxu0 0
    %451 = vmatpush1.bf16.msra.mxu0 0
    %452 = vmatprep.mubr.bf16.mxu0 0
    %453 = vmatmul.mubr.bf16.gmra.mrb[0].mxu0 %v348
    %v454 = vpop.f32.mrb[0].mxu0
    %v455 = vadd.f32 %v370, %v454
    %v456 = vpop.f32.mrb[0].mxu0
    %v457 = vpop.f32.mrb[0].mxu0
    %v458 = vpop.f32.mrb[0].mxu0
    %459 = vdwg.mxu0
    %v460 = vlaneseq
    %v461 = vand.u32 %v460, 127
    %vm462 = vcmp.lt.s32.totalorder %v461, 4
    %vm463 = vcmp.eq.s32.totalorder %v461, 4
    %v464 = vsel %vm462, %v455, -1e+30
    %465 = vmax.xlane.f32.xlu0 %v464
    %v466 = vpop.xlane.xlu0 %465
    %v467 = vsub.f32 %v464, %v466
    %v468 = vmul.f32 %v467, 1.442695
    %v469 = vpow.pop %v468
    %470 = vadd.xlane.f32.xlu0 %v469
    %v471 = vpop.xlane.xlu0 %470
    %v472 = vrcp.pop %v471
    %v473 = vmul.f32 %v469, %v472
    %v474 = vsel %vm463, %v455, 0.0
    %475 = vadd.xlane.f32.xlu0 %v474
    %v476 = vpop.xlane.xlu0 %475
    %v477 = vsub.f32 0.0, %v476
    %v478 = vmul.f32 %v477, 1.442695
    %v479 = vpow.pop %v478
    %v480 = vadd.f32 %v479, 1.0
    %v481 = vrcp.pop %v480
    %v482 = vmul.f32 1.0, %v481
    %vm483 = vcmask 31744
    %484 = vst.msk [vmem:[#allocation10] sm:$0xff] %vm483, %v473
    %vm485 = vcmask 7168
    %486 = vst.msk [vmem:[#allocation11] sm:$0xff] %vm485, %v482
    // Predicated region
    $region46: #{tpu_custom_call.1} parent=1 // pred_check
      _
    $region47: #{tpu_custom_call.1} parent=1 // pred_check_branch
      %488 = sbr.rel (0) target = $region49
    $region48: #{tpu_custom_call.1} parent=1 // pred_region
      %s490 = ssub.s32 128, 32
      %491 = vsyncadd [#allocation4], %s490
      %s492 = sshll.u32 [#allocation10], 4
      %s493 = int_to_ptr.vmem [resolvable:$true] %s492
      %498 = dma.vmem_to_hbm [thread:$0]  %s493, 32, %s7, [#allocation4], 32, 32, 2
    $region49: #{tpu_custom_call.1} parent=1 // pred_fallthru
      _
    // Predicated region
    $region50: #{tpu_custom_call.1} parent=1 // pred_check
      _
    $region51: #{tpu_custom_call.1} parent=1 // pred_check_branch
      %500 = sbr.rel (0) target = $region53
    $region52: #{tpu_custom_call.1} parent=1 // pred_region
      // Predicated region
      $region54: #{tpu_custom_call.1} parent=52 // pred_check
        _
      $region55: #{tpu_custom_call.1} parent=52 // pred_check_branch
        %502 = sbr.rel (0) target = $region57
      $region56: #{tpu_custom_call.1} parent=52 // pred_region
        // Predicated region
        $region58: #{tpu_custom_call.1} parent=56 // pred_check
          _
        $region59: #{tpu_custom_call.1} parent=56 // pred_check_branch
          %504 = sbr.rel target = $region61
        $region60: #{tpu_custom_call.1} parent=56 // pred_region
          // Predicated region
          $region73: #{tpu_custom_call.1} parent=60 // pred_check
            _
          $region74: #{tpu_custom_call.1} parent=60 // pred_check_branch
            %519 = sbr.rel (0) target = $region76
          $region75: #{tpu_custom_call.1} parent=60 // pred_region
            loop: start=0, step=1, limit=1
            $region77: #{tpu_custom_call.1} parent=75 // loop_pre_header
              _
            $region78: #{tpu_custom_call.1} parent=75 // loop_header
              %s522 = sphi 0, %s526
              %p523 = scmp.ge.s32.totalorder %s522, 1
              %s527 = sphi [#allocation11], [#allocation11]
              %s528 = sphi %s8, %s8
            $region79: #{tpu_custom_call.1} parent=75 // loop_header_branch
              %525 = sbr.rel (%p523) target = $region83
            $region80: #{tpu_custom_call.1} parent=75 // loop_body
              %v529 = vld [vmem:[%s527] sm:$0x3]
              %530 = vst [vmem:[%s528] sm:$0x3] %v529
            $region81: #{tpu_custom_call.1} parent=75 // loop_footer
              %s526 = sadd.s32 1, %s522
            $region82: #{tpu_custom_call.1} parent=75 // loop_footer_branch
              %521 = sbr.rel target = $region78
            $region83: #{tpu_custom_call.1} parent=75 // loop_exit
              _
          $region76: #{tpu_custom_call.1} parent=60 // pred_fallthru
            _
        $region61: #{tpu_custom_call.1} parent=56 // pred_fallthru
          _
        // Predicated region
        $region62: #{tpu_custom_call.1} parent=56 // pred_check
          _
        $region63: #{tpu_custom_call.1} parent=56 // pred_check_branch
          %506 = sbr.rel (0) target = $region65
        $region64: #{tpu_custom_call.1} parent=56 // pred_region
          loop: start=0, step=1, limit=1
          $region66: #{tpu_custom_call.1} parent=64 // loop_pre_header
            _
          $region67: #{tpu_custom_call.1} parent=64 // loop_header
            %s509 = sphi 0, %s513
            %p510 = scmp.ge.s32.totalorder %s509, 1
            %s514 = sphi [#allocation11], [#allocation11]
            %s515 = sphi %s8, %s8
          $region68: #{tpu_custom_call.1} parent=64 // loop_header_branch
            %512 = sbr.rel (%p510) target = $region72
          $region69: #{tpu_custom_call.1} parent=64 // loop_body
            %v516 = vld [vmem:[%s514] sm:$0x3]
            %517 = vst [vmem:[%s515] sm:$0x3] %v516
          $region70: #{tpu_custom_call.1} parent=64 // loop_footer
            %s513 = sadd.s32 1, %s509
          $region71: #{tpu_custom_call.1} parent=64 // loop_footer_branch
            %508 = sbr.rel target = $region67
          $region72: #{tpu_custom_call.1} parent=64 // loop_exit
            _
        $region65: #{tpu_custom_call.1} parent=56 // pred_fallthru
          _
      $region57: #{tpu_custom_call.1} parent=52 // pred_fallthru
        _
      %531 = vnop
    $region53: #{tpu_custom_call.1} parent=1 // pred_fallthru
      _
    // Predicated region
    $region84: #{tpu_custom_call.1} parent=1 // pred_check
      _
    $region85: #{tpu_custom_call.1} parent=1 // pred_check_branch
      %533 = sbr.rel (0) target = $region87
    $region86: #{tpu_custom_call.1} parent=1 // pred_region
      %534 = dma.done [#allocation4], 128
    $region87: #{tpu_custom_call.1} parent=1 // pred_fallthru
      _
    // Predicated region
    $region88: #{tpu_custom_call.1} parent=1 // pred_check
      _
    $region89: #{tpu_custom_call.1} parent=1 // pred_check_branch
      %536 = sbr.rel (0) target = $region91
    $region90: #{tpu_custom_call.1} parent=1 // pred_region
      _
    $region91: #{tpu_custom_call.1} parent=1 // pred_fallthru
      _
    %537 = vsyncpa [#allocation3], 1
    %538 = vsyncpa [#allocation6], 1
    %539 = vsyncpa [#allocation9], 1
    %540 = vsyncpa [#allocation4], 1

</llo_original>
